<compile_context>
chip_gen: v5e
topology: v5e:2x2
jax: 0.10.0
libtpu: 0.0.40
codegen_flags: <defaults>
</compile_context>

<pallas_src>
import functools

import jax
import jax.numpy as jnp
from jax.experimental import pallas as pl
from jax.experimental.pallas import tpu as pltpu

_LANE = 128     # TPU lane width (lane-dense output blocks must be multiples of it)
_TB_MAX = 2048  # max rows per grid step: (2048, 80) bf16 tile = 320 KB, trivial in VMEM


def _round_up(x, m):
    return ((x + m - 1) // m) * m


def _cdiv(a, b):
    return -(-a // b)


def _select_tile(B, tb_max=_TB_MAX):
    """Pick (tb, Bp): tb multiple of 128 (lane-dense output), tail padding
    bounded to <=128 rows per grid step, and >=2 grid steps once there is
    enough work so v7x's two TensorCores both get a share."""
    n_steps = max(1, _cdiv(B, tb_max))
    if n_steps < 2 and B >= 2 * _LANE:
        n_steps = 2
    tb = _round_up(_cdiv(B, n_steps), _LANE)
    return tb, n_steps * tb


def swiglu_ranker_kernel(x_ref, w_ref, b_ref, wo_ref, bo_ref, o_ref):
    # x_ref : (tb, C)      mask rows (bf16 for binary masks, else f32)
    # w_ref : (C, 2*Hp)    fused in-projection, each 240-wide half zero-padded to 256
    # b_ref : (1, 2*Hp)    fused (padded) in-projection bias
    # wo_ref: (Hp, 1)      out-projection, rows 240..255 are zero
    # bo_ref: (1, 1)       out-projection bias
    # o_ref : (1, tb)      lane-dense scores for this row tile
    Hp = w_ref.shape[1] // 2
    x = x_ref[...]
    # Single MXU pass over the x tile, f32 accumulation.
    h = jnp.dot(x, w_ref[...], preferred_element_type=jnp.float32) + b_ref[...]
    a = h[:, :Hp]                      # 128/256-aligned lane slices
    g = h[:, Hp:]
    c = a * (g * jax.nn.sigmoid(g))    # a * silu(g); padded lanes stay exactly 0
    y = jnp.dot(c, wo_ref[...], preferred_element_type=jnp.float32) + bo_ref[...]
    # (tb, 1) -> (1, tb): tiny sublane->lane relayout of the score vector
    # (XLU is otherwise idle) so the store side is full-width, unmasked vst.
    o_ref[...] = y.reshape(1, -1).astype(o_ref.dtype)


@functools.partial(jax.jit, static_argnames=("tb_max", "mask_is_binary"))
def swiglu_ranker(mask, w_in, b_in, w_out, b_out, *, tb_max=_TB_MAX,
                  mask_is_binary=True):
    """mask: (B, 80) -> (B,) f32 scores (SwiGlu ranker forward, eval mode).

    w_in : (C, 2H)  = PyTorch in_layer.weight.T,  b_in : (2H,) or (1, 2H)
    w_out: (H, 1)   = PyTorch out_layer.weight.T, b_out: scalar / (1,) / (1, 1)
    """
    B, C = mask.shape
    b_in = jnp.reshape(b_in, (1, -1))
    w_out = jnp.reshape(w_out, (-1, 1))
    b_out = jnp.reshape(b_out, (1, 1))
    H = w_in.shape[1] // 2
    Hp = _round_up(H, _LANE)           # 240 -> 256: matches the v6e/v7x 256-wide MXU tile

    # Re-fuse the in-projection with zero-padded 256-lane halves (done per call
    # for a self-contained demo; in practice fold this into the params once).
    # Zeros in the padded weight columns, biases AND the matching W_out rows
    # guarantee the padding never leaks into the score.
    w_fused = (jnp.zeros((C, 2 * Hp), w_in.dtype)
               .at[:, :H].set(w_in[:, :H])
               .at[:, Hp:Hp + H].set(w_in[:, H:]))
    b_fused = (jnp.zeros((1, 2 * Hp), b_in.dtype)
               .at[:, :H].set(b_in[:, :H])
               .at[:, Hp:Hp + H].set(b_in[:, H:]))
    w_out_p = jnp.zeros((Hp, 1), w_out.dtype).at[:H, :].set(w_out)

    # Binary 0/1 masks are exact in bf16 -> halve the dominant HBM stream.
    # Gated on mask_is_binary so soft/fractional masks keep full precision.
    if mask_is_binary and mask.dtype == jnp.float32:
        x = mask.astype(jnp.bfloat16)
    else:
        x = mask

    tb, Bp = _select_tile(B, tb_max)
    if Bp != B:                        # pad (never silently drop) remainder rows
        x = jnp.pad(x, ((0, Bp - B), (0, 0)))

    out = pl.pallas_call(
        swiglu_ranker_kernel,
        out_shape=jax.ShapeDtypeStruct((1, Bp), jnp.float32),
        grid_spec=pltpu.PrefetchScalarGridSpec(
            num_scalar_prefetch=0,
            grid=(Bp // tb,),
            in_specs=[
                pl.BlockSpec((tb, C), lambda i: (i, 0)),        # mask rows
                pl.BlockSpec((C, 2 * Hp), lambda i: (0, 0)),    # fused W_in (padded)
                pl.BlockSpec((1, 2 * Hp), lambda i: (0, 0)),    # fused b_in (padded)
                pl.BlockSpec((Hp, 1), lambda i: (0, 0)),        # W_out (padded rows)
                pl.BlockSpec((1, 1), lambda i: (0, 0)),         # b_out
            ],
            out_specs=pl.BlockSpec((1, tb), lambda i: (0, i)),  # lane-dense scores
        ),
        compiler_params=pltpu.CompilerParams(
            dimension_semantics=("parallel",),
            vmem_limit_bytes=32 * 1024 * 1024,
        ),
    )(x, w_fused, b_fused, w_out_p, b_out)

    return out[0, :B]


def reference(mask, w_in, b_in, w_out, b_out):
    # Pure-JAX reference matching the PyTorch forward (eval mode).
    h = mask @ w_in + jnp.reshape(b_in, (1, -1))
    H = w_in.shape[1] // 2
    a, b = h[:, :H], h[:, H:]
    c = a * (b * jax.nn.sigmoid(b))
    return (c @ jnp.reshape(w_out, (-1, 1)) + jnp.reshape(b_out, (1, 1)))[:, 0]


if __name__ == "__main__":
    input_dim = 80              # fixed by the module ("mask must have 80 channels")
    expansion_factor = 3
    H = input_dim * expansion_factor          # 240

    key = jax.random.PRNGKey(0)
    k1, k2, k3, k4, k5 = jax.random.split(key, 5)

    # PyTorch Linear weight is (out, in); we store the transposed (in, out)
    # matrices so the kernel computes x @ W directly.
    w_in = jax.random.normal(k1, (input_dim, 2 * H), jnp.float32) * 0.05
    b_in = jax.random.normal(k2, (1, 2 * H), jnp.float32) * 0.05
    w_out = jax.random.normal(k3, (H, 1), jnp.float32) * 0.05
    b_out = jax.random.normal(k4, (1, 1), jnp.float32) * 0.05

    # Batches of binary frequency masks (B, 80), like SpecAugment would emit.
    # B=16 exercises the padded single-step grid, B=256 a 2-step lane-dense grid.
    for B in (16, 256):
        mask = jax.random.bernoulli(k5, p=0.8, shape=(B, input_dim)).astype(jnp.float32)
        y = jax.block_until_ready(swiglu_ranker(mask, w_in, b_in, w_out, b_out))
        y_ref = reference(mask, w_in, b_in, w_out, b_out)
        assert y.shape == (B,), f"bad output shape at B={B}"
        assert jnp.allclose(y, y_ref, atol=1e-5, rtol=1e-5), f"mismatch vs reference at B={B}"

    print("KERNEL_OK")
</pallas_src>

<mosaic_0001>
module attributes {stable_mosaic.version = 11 : i64} {
  func.func @swiglu_ranker_kernel(%arg0: i32, %arg1: memref<128x80xbf16, #tpu.memory_space<vmem>>, %arg2: memref<80x512xf32, #tpu.memory_space<vmem>>, %arg3: memref<1x512xf32, #tpu.memory_space<vmem>>, %arg4: memref<256x1xf32, #tpu.memory_space<vmem>>, %arg5: memref<1x1xf32, #tpu.memory_space<vmem>>, %arg6: memref<1x128xf32, #tpu.memory_space<vmem>>) attributes {dimension_semantics = [#tpu.dimension_semantics<parallel>], iteration_bounds = array<i64: 1>, scalar_prefetch = 0 : i64, scratch_operands = 0 : i64, tpu.core_type = #tpu.core_type<tc>, window_params = [{transform_indices = @transform_0, window_bounds = array<i64: 128, 80>}, {pipeline_mode = #tpu.pipeline_mode<synchronous>, transform_indices = @transform_1, window_bounds = array<i64: 80, 512>}, {pipeline_mode = #tpu.pipeline_mode<synchronous>, transform_indices = @transform_2, window_bounds = array<i64: 1, 512>}, {pipeline_mode = #tpu.pipeline_mode<synchronous>, transform_indices = @transform_3, window_bounds = array<i64: 256, 1>}, {pipeline_mode = #tpu.pipeline_mode<synchronous>, transform_indices = @transform_4, window_bounds = array<i64: 1, 1>}, {transform_indices = @transform_5, window_bounds = array<i64: 1, 128>}]} {
    %c0 = arith.constant 0 : index
    %c0_0 = arith.constant 0 : index
    %0 = vector.load %arg1[%c0, %c0_0] : memref<128x80xbf16, #tpu.memory_space<vmem>>, vector<128x80xbf16>
    %c0_1 = arith.constant 0 : index
    %c0_2 = arith.constant 0 : index
    %1 = vector.load %arg2[%c0_1, %c0_2] : memref<80x512xf32, #tpu.memory_space<vmem>>, vector<80x512xf32>
    %cst = arith.constant dense<0.000000e+00> : vector<128x512xf32>
    %2 = tpu.matmul %0, %1, %cst {dimension_numbers = #tpu.dot_dimension_numbers<[1], [0], [0], [1], [0, 0, 1, 1], [], []>} : vector<128x80xbf16>, vector<80x512xf32>, vector<128x512xf32> -> vector<128x512xf32>
    %c0_3 = arith.constant 0 : index
    %c0_4 = arith.constant 0 : index
    %3 = vector.load %arg3[%c0_3, %c0_4] : memref<1x512xf32, #tpu.memory_space<vmem>>, vector<1x512xf32>
    %4 = vector.broadcast %3 : vector<1x512xf32> to vector<128x512xf32>
    %5 = arith.addf %2, %4 : vector<128x512xf32>
    %6 = vector.extract_strided_slice %5 {offsets = [0, 0], sizes = [128, 256], strides = [1, 1]} : vector<128x512xf32> to vector<128x256xf32>
    %7 = vector.extract_strided_slice %5 {offsets = [0, 256], sizes = [128, 256], strides = [1, 1]} : vector<128x512xf32> to vector<128x256xf32>
    %8 = arith.negf %7 : vector<128x256xf32>
    %9 = math.exp %8 : vector<128x256xf32>
    %cst_5 = arith.constant 1.000000e+00 : f32
    %10 = vector.broadcast %cst_5 : f32 to vector<128x256xf32>
    %11 = arith.addf %10, %9 : vector<128x256xf32>
    %12 = arith.divf %10, %11 : vector<128x256xf32>
    %13 = arith.mulf %7, %12 : vector<128x256xf32>
    %14 = arith.mulf %6, %13 : vector<128x256xf32>
    %c0_6 = arith.constant 0 : index
    %c0_7 = arith.constant 0 : index
    %15 = vector.load %arg4[%c0_6, %c0_7] : memref<256x1xf32, #tpu.memory_space<vmem>>, vector<256x1xf32>
    %cst_8 = arith.constant dense<0.000000e+00> : vector<128x1xf32>
    %16 = tpu.matmul %14, %15, %cst_8 {dimension_numbers = #tpu.dot_dimension_numbers<[1], [0], [0], [1], [0, 0, 1, 1], [], []>} : vector<128x256xf32>, vector<256x1xf32>, vector<128x1xf32> -> vector<128x1xf32>
    %c0_9 = arith.constant 0 : index
    %c0_10 = arith.constant 0 : index
    %17 = vector.load %arg5[%c0_9, %c0_10] : memref<1x1xf32, #tpu.memory_space<vmem>>, vector<1x1xf32>
    %18 = vector.broadcast %17 : vector<1x1xf32> to vector<128x1xf32>
    %19 = arith.addf %16, %18 : vector<128x1xf32>
    %20 = vector.shape_cast %19 : vector<128x1xf32> to vector<1x128xf32>
    %c0_11 = arith.constant 0 : index
    %c0_12 = arith.constant 0 : index
    %21 = vector.load %arg6[%c0_11, %c0_12] : memref<1x128xf32, #tpu.memory_space<vmem>>, vector<1x128xf32>
    tpu.vector_store %arg6[%c0_11, %c0_12], %20 {strides = array<i32>} : memref<1x128xf32, #tpu.memory_space<vmem>>, vector<1x128xf32>,
    return
  }
  func.func @transform_0(%arg0: i32) -> (i32, i32) {
    %c0_i32 = arith.constant 0 : i32
    %c0_i32_0 = arith.constant 0 : i32
    return %arg0, %c0_i32 : i32, i32
  }
  func.func @transform_1(%arg0: i32) -> (i32, i32) {
    %c0_i32 = arith.constant 0 : i32
    %c0_i32_0 = arith.constant 0 : i32
    %c0_i32_1 = arith.constant 0 : i32
    return %c0_i32, %c0_i32_0 : i32, i32
  }
  func.func @transform_2(%arg0: i32) -> (i32, i32) {
    %c0_i32 = arith.constant 0 : i32
    %c0_i32_0 = arith.constant 0 : i32
    %c0_i32_1 = arith.constant 0 : i32
    return %c0_i32, %c0_i32_0 : i32, i32
  }
  func.func @transform_3(%arg0: i32) -> (i32, i32) {
    %c0_i32 = arith.constant 0 : i32
    %c0_i32_0 = arith.constant 0 : i32
    %c0_i32_1 = arith.constant 0 : i32
    return %c0_i32, %c0_i32_0 : i32, i32
  }
  func.func @transform_4(%arg0: i32) -> (i32, i32) {
    %c0_i32 = arith.constant 0 : i32
    %c0_i32_0 = arith.constant 0 : i32
    %c0_i32_1 = arith.constant 0 : i32
    return %c0_i32, %c0_i32_0 : i32, i32
  }
  func.func @transform_5(%arg0: i32) -> (i32, i32) {
    %c0_i32 = arith.constant 0 : i32
    %c0_i32_0 = arith.constant 0 : i32
    return %c0_i32, %arg0 : i32, i32
  }
}

</mosaic_0001>

<llo_original>
// kernel: swiglu_ranker.1
$region0: #{swiglu_ranker.1}
  #allocation0 [shape = 'u32[]', space=smem, size = 0x4, offset = 0x4, fixed_abs, tag = 'smem constant byte address 0x4 - core index']
  #allocation1 [shape = 'u32[72,128]{1,0:T(1,128)}', space=vmem, size = 0x9000, scoped, tag = 'internal scratch']
  #allocation2 [shape = 'f32[1,1]{1,0:T(1,128)S(1)}', space=vmem, size = 0x200, scoped, tag = 'scoped memory for swiglu_ranker.1']
  %s0 = inlined_call_operand.vmem [shape: bf16[128,80], index: 0, kind: input, shape index: {}]
  %s1 = inlined_call_operand.vmem [shape: f32[80,512], index: 1, kind: input, shape index: {}]
  %s2 = inlined_call_operand.vmem [shape: f32[1,512], index: 2, kind: input, shape index: {}]
  %s3 = inlined_call_operand.vmem [shape: f32[256,1], index: 3, kind: input, shape index: {}]
  %s4 = inlined_call_operand.<no memory space> [shape: f32[1,1], index: 4, kind: input, shape index: {}]
  %s5 = inlined_call_operand.vmem [shape: f32[1,128], index: 5, kind: output, shape index: {}]
  %s6 = sld [smem:[#allocation0]]
  $region30: #{swiglu_ranker.1} parent=0
    _
  %s8 = ssub.s32 1, %s6
  %s9 = scalar_select 0, %s8, %s6
  %v10 = vstv %s4
  %11 = vst [vmem:[#allocation2] sm:$0x1] %v10
  // Predicated region
  $region2: #{swiglu_ranker.1} parent=0 // pred_check
    _
  $region3: #{swiglu_ranker.1} parent=0 // pred_check_branch
    %13 = sbr.rel (0) target = $region5
  $region4: #{swiglu_ranker.1} parent=0 // pred_region
    _
  $region5: #{swiglu_ranker.1} parent=0 // pred_fallthru
    _
  // Predicated region
  $region6: #{swiglu_ranker.1} parent=0 // pred_check
    _
  $region7: #{swiglu_ranker.1} parent=0 // pred_check_branch
    %15 = sbr.rel (0) target = $region9
  $region8: #{swiglu_ranker.1} parent=0 // pred_region
    _
  $region9: #{swiglu_ranker.1} parent=0 // pred_fallthru
    _
  // Predicated region
  $region10: #{swiglu_ranker.1} parent=0 // pred_check
    _
  $region11: #{swiglu_ranker.1} parent=0 // pred_check_branch
    %17 = sbr.rel (0) target = $region13
  $region12: #{swiglu_ranker.1} parent=0 // pred_region
    _
  $region13: #{swiglu_ranker.1} parent=0 // pred_fallthru
    _
  // Predicated region
  $region14: #{swiglu_ranker.1} parent=0 // pred_check
    _
  $region15: #{swiglu_ranker.1} parent=0 // pred_check_branch
    %19 = sbr.rel (0) target = $region17
  $region16: #{swiglu_ranker.1} parent=0 // pred_region
    _
  $region17: #{swiglu_ranker.1} parent=0 // pred_fallthru
    _
  // Predicated region
  $region18: #{swiglu_ranker.1} parent=0 // pred_check
    _
  $region19: #{swiglu_ranker.1} parent=0 // pred_check_branch
    %21 = sbr.rel (0) target = $region21
  $region20: #{swiglu_ranker.1} parent=0 // pred_region
    _
  $region21: #{swiglu_ranker.1} parent=0 // pred_fallthru
    _
  %v22 = vld [vmem:[%s0] sm:$0xf]
  %v23 = vld [vmem:[%s0 + $0x4] sm:$0xf]
  %v24 = vld [vmem:[%s0 + $0x8] sm:$0xf]
  %v25 = vld [vmem:[%s0 + $0xc] sm:$0xf]
  %v26 = vld [vmem:[%s0 + $0x10] sm:$0xf]
  %v27 = vld [vmem:[%s0 + $0x14] sm:$0xf]
  %v28 = vld [vmem:[%s0 + $0x18] sm:$0xf]
  %v29 = vld [vmem:[%s0 + $0x1c] sm:$0xf]
  %v30 = vld [vmem:[%s0 + $0x20] sm:$0xf]
  %v31 = vld [vmem:[%s0 + $0x24] sm:$0xf]
  %v32 = vld [vmem:[%s0 + $0x28] sm:$0xf]
  %v33 = vld [vmem:[%s0 + $0x2c] sm:$0xf]
  %v34 = vld [vmem:[%s0 + $0x30] sm:$0xf]
  %v35 = vld [vmem:[%s0 + $0x34] sm:$0xf]
  %v36 = vld [vmem:[%s0 + $0x38] sm:$0xf]
  %v37 = vld [vmem:[%s0 + $0x3c] sm:$0xf]
  %v38 = vld [vmem:[%s1] sm:$0xff]
  %v39 = vld [vmem:[%s1 + $0x8] sm:$0xff]
  %v40 = vld [vmem:[%s1 + $0x10] sm:$0xff]
  %v41 = vld [vmem:[%s1 + $0x18] sm:$0xff]
  %v42 = vld [vmem:[%s1 + $0x20] sm:$0xff]
  %v43 = vld [vmem:[%s1 + $0x28] sm:$0xff]
  %v44 = vld [vmem:[%s1 + $0x30] sm:$0xff]
  %v45 = vld [vmem:[%s1 + $0x38] sm:$0xff]
  %v46 = vld [vmem:[%s1 + $0x40] sm:$0xff]
  %v47 = vld [vmem:[%s1 + $0x48] sm:$0xff]
  %v48 = vld [vmem:[%s1 + $0x50] sm:$0xff]
  %v49 = vld [vmem:[%s1 + $0x58] sm:$0xff]
  %v50 = vld [vmem:[%s1 + $0x60] sm:$0xff]
  %v51 = vld [vmem:[%s1 + $0x68] sm:$0xff]
  %v52 = vld [vmem:[%s1 + $0x70] sm:$0xff]
  %v53 = vld [vmem:[%s1 + $0x78] sm:$0xff]
  %v54 = vld [vmem:[%s1 + $0x80] sm:$0xff]
  %v55 = vld [vmem:[%s1 + $0x88] sm:$0xff]
  %v56 = vld [vmem:[%s1 + $0x90] sm:$0xff]
  %v57 = vld [vmem:[%s1 + $0x98] sm:$0xff]
  %v58 = vld [vmem:[%s1 + $0xa0] sm:$0xff]
  %v59 = vld [vmem:[%s1 + $0xa8] sm:$0xff]
  %v60 = vld [vmem:[%s1 + $0xb0] sm:$0xff]
  %v61 = vld [vmem:[%s1 + $0xb8] sm:$0xff]
  %v62 = vld [vmem:[%s1 + $0xc0] sm:$0xff]
  %v63 = vld [vmem:[%s1 + $0xc8] sm:$0xff]
  %v64 = vld [vmem:[%s1 + $0xd0] sm:$0xff]
  %v65 = vld [vmem:[%s1 + $0xd8] sm:$0xff]
  %v66 = vld [vmem:[%s1 + $0xe0] sm:$0xff]
  %v67 = vld [vmem:[%s1 + $0xe8] sm:$0xff]
  %v68 = vld [vmem:[%s1 + $0xf0] sm:$0xff]
  %v69 = vld [vmem:[%s1 + $0xf8] sm:$0xff]
  %v70 = vld [vmem:[%s1 + $0x100] sm:$0xff]
  %v71 = vld [vmem:[%s1 + $0x108] sm:$0xff]
  %v72 = vld [vmem:[%s1 + $0x110] sm:$0xff]
  %v73 = vld [vmem:[%s1 + $0x118] sm:$0xff]
  %v74 = vld [vmem:[%s1 + $0x120] sm:$0xff]
  %v75 = vld [vmem:[%s1 + $0x128] sm:$0xff]
  %v76 = vld [vmem:[%s1 + $0x130] sm:$0xff]
  %v77 = vld [vmem:[%s1 + $0x138] sm:$0xff]
  %v78 = vld [vmem:[%s2] sm:$0xf]
  %v80 = vperm.slane %v78, 0
  %v81 = vperm.slane %v78, 1
  %v82 = vperm.slane %v78, 2
  %v83 = vperm.slane %v78, 3
  %v104 = vunpack.c.l.b16 %v22
  %v105 = vunpack.c.l.b16 %v23
  %v106 = vunpack.c.l.b16 %v24
  %v107 = vunpack.c.l.b16 %v25
  %v108 = vunpack.c.l.b16 %v26
  %v109 = vunpack.c.l.b16 %v27
  %v110 = vunpack.c.l.b16 %v28
  %v111 = vunpack.c.l.b16 %v29
  %v112 = vunpack.c.l.b16 %v30
  %v113 = vunpack.c.l.b16 %v31
  %v114 = vunpack.c.l.b16 %v32
  %v115 = vunpack.c.l.b16 %v33
  %v116 = vunpack.c.l.b16 %v34
  %v117 = vunpack.c.l.b16 %v35
  %v118 = vunpack.c.l.b16 %v36
  %v119 = vunpack.c.l.b16 %v37
  %v120 = vpack.c.b16 %v105, %v104
  %v121 = vpack.c.b16 %v107, %v106
  %v122 = vpack.c.b16 %v109, %v108
  %v123 = vpack.c.b16 %v111, %v110
  %v124 = vpack.c.b16 %v113, %v112
  %v125 = vpack.c.b16 %v115, %v114
  %v126 = vpack.c.b16 %v117, %v116
  %v127 = vpack.c.b16 %v119, %v118
  %vm128 = vcmask 654336
  %v130 = vsel %vm128, %v120, 0
  %v133 = vsel %vm128, %v121, 0
  %v136 = vsel %vm128, %v122, 0
  %v139 = vsel %vm128, %v123, 0
  %v142 = vsel %vm128, %v124, 0
  %v145 = vsel %vm128, %v125, 0
  %v148 = vsel %vm128, %v126, 0
  %v151 = vsel %vm128, %v127, 0
  %153 = vmatpush.msra.mxu0 0.0
  %154 = vmatpush.msra.mxu0 0.0
  %155 = vmatpush.msra.mxu0 0.0
  %156 = vmatpush.msra.mxu0 0.0
  %157 = vmatpush.msra.mxu0 0.0
  %158 = vmatpush.msra.mxu0 0.0
  %159 = vmatpush.msra.mxu0 %v74
  %160 = vmatpush.msra.mxu0 %v70
  %161 = vmatpush.msra.mxu0 %v66
  %162 = vmatpush.msra.mxu0 %v62
  %163 = vmatpush.msra.mxu0 %v58
  %164 = vmatpush.msra.mxu0 %v54
  %165 = vmatpush.msra.mxu0 %v50
  %166 = vmatpush.msra.mxu0 %v46
  %167 = vmatpush.msra.mxu0 %v42
  %168 = vmatpush.msra.mxu0 %v38
  %169 = vmatmul.bf16.gmra.mxu0 %v130
  %v170 = vpop.f32.mrf.mxu0
  %v171 = vadd.f32 %v80, %v170
  %v172 = vpop.f32.mrf.mxu0
  %v173 = vadd.f32 %v80, %v172
  %174 = vmatmul.bf16.gmra.mxu0 %v133
  %v175 = vpop.f32.mrf.mxu0
  %v176 = vadd.f32 %v80, %v175
  %v177 = vpop.f32.mrf.mxu0
  %v178 = vadd.f32 %v80, %v177
  %179 = vmatmul.bf16.gmra.mxu0 %v136
  %v180 = vpop.f32.mrf.mxu0
  %v181 = vadd.f32 %v80, %v180
  %v182 = vpop.f32.mrf.mxu0
  %v183 = vadd.f32 %v80, %v182
  %184 = vmatmul.bf16.gmra.mxu0 %v139
  %v185 = vpop.f32.mrf.mxu0
  %v186 = vadd.f32 %v80, %v185
  %v187 = vpop.f32.mrf.mxu0
  %v188 = vadd.f32 %v80, %v187
  %189 = vmatmul.bf16.gmra.mxu0 %v142
  %v190 = vpop.f32.mrf.mxu0
  %v191 = vadd.f32 %v80, %v190
  %v192 = vpop.f32.mrf.mxu0
  %v193 = vadd.f32 %v80, %v192
  %194 = vmatmul.bf16.gmra.mxu0 %v145
  %v195 = vpop.f32.mrf.mxu0
  %v196 = vadd.f32 %v80, %v195
  %v197 = vpop.f32.mrf.mxu0
  %v198 = vadd.f32 %v80, %v197
  %199 = vmatmul.bf16.gmra.mxu0 %v148
  %v200 = vpop.f32.mrf.mxu0
  %v201 = vadd.f32 %v80, %v200
  %v202 = vpop.f32.mrf.mxu0
  %v203 = vadd.f32 %v80, %v202
  %204 = vmatmul.bf16.gmra.mxu0 %v151
  %v205 = vpop.f32.mrf.mxu0
  %v206 = vadd.f32 %v80, %v205
  %v207 = vpop.f32.mrf.mxu0
  %v208 = vadd.f32 %v80, %v207
  %209 = vdwg.mxu0
  %210 = vmatpush.msra.mxu0 0.0
  %211 = vmatpush.msra.mxu0 0.0
  %212 = vmatpush.msra.mxu0 0.0
  %213 = vmatpush.msra.mxu0 0.0
  %214 = vmatpush.msra.mxu0 0.0
  %215 = vmatpush.msra.mxu0 0.0
  %216 = vmatpush.msra.mxu0 %v75
  %217 = vmatpush.msra.mxu0 %v71
  %218 = vmatpush.msra.mxu0 %v67
  %219 = vmatpush.msra.mxu0 %v63
  %220 = vmatpush.msra.mxu0 %v59
  %221 = vmatpush.msra.mxu0 %v55
  %222 = vmatpush.msra.mxu0 %v51
  %223 = vmatpush.msra.mxu0 %v47
  %224 = vmatpush.msra.mxu0 %v43
  %225 = vmatpush.msra.mxu0 %v39
  %226 = vmatmul.bf16.gmra.mxu0 %v130
  %v227 = vpop.f32.mrf.mxu0
  %v228 = vadd.f32 %v81, %v227
  %v229 = vpop.f32.mrf.mxu0
  %v230 = vadd.f32 %v81, %v229
  %231 = vmatmul.bf16.gmra.mxu0 %v133
  %v232 = vpop.f32.mrf.mxu0
  %v233 = vadd.f32 %v81, %v232
  %v234 = vpop.f32.mrf.mxu0
  %v235 = vadd.f32 %v81, %v234
  %236 = vmatmul.bf16.gmra.mxu0 %v136
  %v237 = vpop.f32.mrf.mxu0
  %v238 = vadd.f32 %v81, %v237
  %v239 = vpop.f32.mrf.mxu0
  %v240 = vadd.f32 %v81, %v239
  %241 = vmatmul.bf16.gmra.mxu0 %v139
  %v242 = vpop.f32.mrf.mxu0
  %v243 = vadd.f32 %v81, %v242
  %v244 = vpop.f32.mrf.mxu0
  %v245 = vadd.f32 %v81, %v244
  %246 = vmatmul.bf16.gmra.mxu0 %v142
  %v247 = vpop.f32.mrf.mxu0
  %v248 = vadd.f32 %v81, %v247
  %v249 = vpop.f32.mrf.mxu0
  %v250 = vadd.f32 %v81, %v249
  %251 = vmatmul.bf16.gmra.mxu0 %v145
  %v252 = vpop.f32.mrf.mxu0
  %v253 = vadd.f32 %v81, %v252
  %v254 = vpop.f32.mrf.mxu0
  %v255 = vadd.f32 %v81, %v254
  %256 = vmatmul.bf16.gmra.mxu0 %v148
  %v257 = vpop.f32.mrf.mxu0
  %v258 = vadd.f32 %v81, %v257
  %v259 = vpop.f32.mrf.mxu0
  %v260 = vadd.f32 %v81, %v259
  %261 = vmatmul.bf16.gmra.mxu0 %v151
  %v262 = vpop.f32.mrf.mxu0
  %v263 = vadd.f32 %v81, %v262
  %v264 = vpop.f32.mrf.mxu0
  %v265 = vadd.f32 %v81, %v264
  %266 = vdwg.mxu0
  %267 = vmatpush.msra.mxu0 0.0
  %268 = vmatpush.msra.mxu0 0.0
  %269 = vmatpush.msra.mxu0 0.0
  %270 = vmatpush.msra.mxu0 0.0
  %271 = vmatpush.msra.mxu0 0.0
  %272 = vmatpush.msra.mxu0 0.0
  %273 = vmatpush.msra.mxu0 %v76
  %274 = vmatpush.msra.mxu0 %v72
  %275 = vmatpush.msra.mxu0 %v68
  %276 = vmatpush.msra.mxu0 %v64
  %277 = vmatpush.msra.mxu0 %v60
  %278 = vmatpush.msra.mxu0 %v56
  %279 = vmatpush.msra.mxu0 %v52
  %280 = vmatpush.msra.mxu0 %v48
  %281 = vmatpush.msra.mxu0 %v44
  %282 = vmatpush.msra.mxu0 %v40
  %283 = vmatmul.bf16.gmra.mxu0 %v130
  %v284 = vpop.f32.mrf.mxu0
  %v285 = vadd.f32 %v82, %v284
  %v286 = vpop.f32.mrf.mxu0
  %v287 = vadd.f32 %v82, %v286
  %288 = vmatmul.bf16.gmra.mxu0 %v133
  %v289 = vpop.f32.mrf.mxu0
  %v290 = vadd.f32 %v82, %v289
  %v291 = vpop.f32.mrf.mxu0
  %v292 = vadd.f32 %v82, %v291
  %293 = vmatmul.bf16.gmra.mxu0 %v136
  %v294 = vpop.f32.mrf.mxu0
  %v295 = vadd.f32 %v82, %v294
  %v296 = vpop.f32.mrf.mxu0
  %v297 = vadd.f32 %v82, %v296
  %298 = vmatmul.bf16.gmra.mxu0 %v139
  %v299 = vpop.f32.mrf.mxu0
  %v300 = vadd.f32 %v82, %v299
  %v301 = vpop.f32.mrf.mxu0
  %v302 = vadd.f32 %v82, %v301
  %303 = vmatmul.bf16.gmra.mxu0 %v142
  %v304 = vpop.f32.mrf.mxu0
  %v305 = vadd.f32 %v82, %v304
  %v306 = vpop.f32.mrf.mxu0
  %v307 = vadd.f32 %v82, %v306
  %308 = vmatmul.bf16.gmra.mxu0 %v145
  %v309 = vpop.f32.mrf.mxu0
  %v310 = vadd.f32 %v82, %v309
  %v311 = vpop.f32.mrf.mxu0
  %v312 = vadd.f32 %v82, %v311
  %313 = vmatmul.bf16.gmra.mxu0 %v148
  %v314 = vpop.f32.mrf.mxu0
  %v315 = vadd.f32 %v82, %v314
  %v316 = vpop.f32.mrf.mxu0
  %v317 = vadd.f32 %v82, %v316
  %318 = vmatmul.bf16.gmra.mxu0 %v151
  %v319 = vpop.f32.mrf.mxu0
  %v320 = vadd.f32 %v82, %v319
  %v321 = vpop.f32.mrf.mxu0
  %v322 = vadd.f32 %v82, %v321
  %323 = vdwg.mxu0
  %324 = vmatpush.msra.mxu0 0.0
  %325 = vmatpush.msra.mxu0 0.0
  %326 = vmatpush.msra.mxu0 0.0
  %327 = vmatpush.msra.mxu0 0.0
  %328 = vmatpush.msra.mxu0 0.0
  %329 = vmatpush.msra.mxu0 0.0
  %330 = vmatpush.msra.mxu0 %v77
  %331 = vmatpush.msra.mxu0 %v73
  %332 = vmatpush.msra.mxu0 %v69
  %333 = vmatpush.msra.mxu0 %v65
  %334 = vmatpush.msra.mxu0 %v61
  %335 = vmatpush.msra.mxu0 %v57
  %336 = vmatpush.msra.mxu0 %v53
  %337 = vmatpush.msra.mxu0 %v49
  %338 = vmatpush.msra.mxu0 %v45
  %339 = vmatpush.msra.mxu0 %v41
  %340 = vmatmul.bf16.gmra.mxu0 %v130
  %v341 = vpop.f32.mrf.mxu0
  %v342 = vadd.f32 %v83, %v341
  %v343 = vpop.f32.mrf.mxu0
  %v344 = vadd.f32 %v83, %v343
  %345 = vmatmul.bf16.gmra.mxu0 %v133
  %v346 = vpop.f32.mrf.mxu0
  %v347 = vadd.f32 %v83, %v346
  %v348 = vpop.f32.mrf.mxu0
  %v349 = vadd.f32 %v83, %v348
  %350 = vmatmul.bf16.gmra.mxu0 %v136
  %v351 = vpop.f32.mrf.mxu0
  %v352 = vadd.f32 %v83, %v351
  %v353 = vpop.f32.mrf.mxu0
  %v354 = vadd.f32 %v83, %v353
  %355 = vmatmul.bf16.gmra.mxu0 %v139
  %v356 = vpop.f32.mrf.mxu0
  %v357 = vadd.f32 %v83, %v356
  %v358 = vpop.f32.mrf.mxu0
  %v359 = vadd.f32 %v83, %v358
  %360 = vmatmul.bf16.gmra.mxu0 %v142
  %v361 = vpop.f32.mrf.mxu0
  %v362 = vadd.f32 %v83, %v361
  %v363 = vpop.f32.mrf.mxu0
  %v364 = vadd.f32 %v83, %v363
  %365 = vmatmul.bf16.gmra.mxu0 %v145
  %v366 = vpop.f32.mrf.mxu0
  %v367 = vadd.f32 %v83, %v366
  %v368 = vpop.f32.mrf.mxu0
  %v369 = vadd.f32 %v83, %v368
  %370 = vmatmul.bf16.gmra.mxu0 %v148
  %v371 = vpop.f32.mrf.mxu0
  %v372 = vadd.f32 %v83, %v371
  %v373 = vpop.f32.mrf.mxu0
  %v374 = vadd.f32 %v83, %v373
  %375 = vmatmul.bf16.gmra.mxu0 %v151
  %v376 = vpop.f32.mrf.mxu0
  %v377 = vadd.f32 %v83, %v376
  %v378 = vpop.f32.mrf.mxu0
  %v379 = vadd.f32 %v83, %v378
  %380 = vdwg.mxu0
  %v381 = vxor.u32 %v285, 2147483648
  %v382 = vxor.u32 %v342, 2147483648
  %v383 = vxor.u32 %v287, 2147483648
  %v384 = vxor.u32 %v344, 2147483648
  %v385 = vxor.u32 %v290, 2147483648
  %v386 = vxor.u32 %v347, 2147483648
  %v387 = vxor.u32 %v292, 2147483648
  %v388 = vxor.u32 %v349, 2147483648
  %v389 = vxor.u32 %v295, 2147483648
  %v390 = vxor.u32 %v352, 2147483648
  %v391 = vxor.u32 %v297, 2147483648
  %v392 = vxor.u32 %v354, 2147483648
  %v393 = vxor.u32 %v300, 2147483648
  %v394 = vxor.u32 %v357, 2147483648
  %v395 = vxor.u32 %v302, 2147483648
  %v396 = vxor.u32 %v359, 2147483648
  %v397 = vxor.u32 %v305, 2147483648
  %v398 = vxor.u32 %v362, 2147483648
  %v399 = vxor.u32 %v307, 2147483648
  %v400 = vxor.u32 %v364, 2147483648
  %v401 = vxor.u32 %v310, 2147483648
  %v402 = vxor.u32 %v367, 2147483648
  %v403 = vxor.u32 %v312, 2147483648
  %v404 = vxor.u32 %v369, 2147483648
  %v405 = vxor.u32 %v315, 2147483648
  %v406 = vxor.u32 %v372, 2147483648
  %v407 = vxor.u32 %v317, 2147483648
  %v408 = vxor.u32 %v374, 2147483648
  %v409 = vxor.u32 %v320, 2147483648
  %v410 = vxor.u32 %v377, 2147483648
  %v411 = vxor.u32 %v322, 2147483648
  %v412 = vxor.u32 %v379, 2147483648
  %v413 = vmul.f32 %v381, 1.442695
  %v414 = vpow.pop %v413
  %v415 = vmul.f32 %v382, 1.442695
  %v416 = vpow.pop %v415
  %v417 = vmul.f32 %v383, 1.442695
  %v418 = vpow.pop %v417
  %v419 = vmul.f32 %v384, 1.442695
  %v420 = vpow.pop %v419
  %v421 = vmul.f32 %v385, 1.442695
  %v422 = vpow.pop %v421
  %v423 = vmul.f32 %v386, 1.442695
  %v424 = vpow.pop %v423
  %v425 = vmul.f32 %v387, 1.442695
  %v426 = vpow.pop %v425
  %v427 = vmul.f32 %v388, 1.442695
  %v428 = vpow.pop %v427
  %v429 = vmul.f32 %v389, 1.442695
  %v430 = vpow.pop %v429
  %v431 = vmul.f32 %v390, 1.442695
  %v432 = vpow.pop %v431
  %v433 = vmul.f32 %v391, 1.442695
  %v434 = vpow.pop %v433
  %v435 = vmul.f32 %v392, 1.442695
  %v436 = vpow.pop %v435
  %v437 = vmul.f32 %v393, 1.442695
  %v438 = vpow.pop %v437
  %v439 = vmul.f32 %v394, 1.442695
  %v440 = vpow.pop %v439
  %v441 = vmul.f32 %v395, 1.442695
  %v442 = vpow.pop %v441
  %v443 = vmul.f32 %v396, 1.442695
  %v444 = vpow.pop %v443
  %v445 = vmul.f32 %v397, 1.442695
  %v446 = vpow.pop %v445
  %v447 = vmul.f32 %v398, 1.442695
  %v448 = vpow.pop %v447
  %v449 = vmul.f32 %v399, 1.442695
  %v450 = vpow.pop %v449
  %v451 = vmul.f32 %v400, 1.442695
  %v452 = vpow.pop %v451
  %v453 = vmul.f32 %v401, 1.442695
  %v454 = vpow.pop %v453
  %v455 = vmul.f32 %v402, 1.442695
  %v456 = vpow.pop %v455
  %v457 = vmul.f32 %v403, 1.442695
  %v458 = vpow.pop %v457
  %v459 = vmul.f32 %v404, 1.442695
  %v460 = vpow.pop %v459
  %v461 = vmul.f32 %v405, 1.442695
  %v462 = vpow.pop %v461
  %v463 = vmul.f32 %v406, 1.442695
  %v464 = vpow.pop %v463
  %v465 = vmul.f32 %v407, 1.442695
  %v466 = vpow.pop %v465
  %v467 = vmul.f32 %v408, 1.442695
  %v468 = vpow.pop %v467
  %v469 = vmul.f32 %v409, 1.442695
  %v470 = vpow.pop %v469
  %v471 = vmul.f32 %v410, 1.442695
  %v472 = vpow.pop %v471
  %v473 = vmul.f32 %v411, 1.442695
  %v474 = vpow.pop %v473
  %v475 = vmul.f32 %v412, 1.442695
  %v476 = vpow.pop %v475
  %v477 = vadd.f32 %v414, 1.0
  %v478 = vadd.f32 %v416, 1.0
  %v479 = vadd.f32 %v418, 1.0
  %v480 = vadd.f32 %v420, 1.0
  %v481 = vadd.f32 %v422, 1.0
  %v482 = vadd.f32 %v424, 1.0
  %v483 = vadd.f32 %v426, 1.0
  %v484 = vadd.f32 %v428, 1.0
  %v485 = vadd.f32 %v430, 1.0
  %v486 = vadd.f32 %v432, 1.0
  %v487 = vadd.f32 %v434, 1.0
  %v488 = vadd.f32 %v436, 1.0
  %v489 = vadd.f32 %v438, 1.0
  %v490 = vadd.f32 %v440, 1.0
  %v491 = vadd.f32 %v442, 1.0
  %v492 = vadd.f32 %v444, 1.0
  %v493 = vadd.f32 %v446, 1.0
  %v494 = vadd.f32 %v448, 1.0
  %v495 = vadd.f32 %v450, 1.0
  %v496 = vadd.f32 %v452, 1.0
  %v497 = vadd.f32 %v454, 1.0
  %v498 = vadd.f32 %v456, 1.0
  %v499 = vadd.f32 %v458, 1.0
  %v500 = vadd.f32 %v460, 1.0
  %v501 = vadd.f32 %v462, 1.0
  %v502 = vadd.f32 %v464, 1.0
  %v503 = vadd.f32 %v466, 1.0
  %v504 = vadd.f32 %v468, 1.0
  %v505 = vadd.f32 %v470, 1.0
  %v506 = vadd.f32 %v472, 1.0
  %v507 = vadd.f32 %v474, 1.0
  %v508 = vadd.f32 %v476, 1.0
  %v509 = vrcp.pop %v477
  %v510 = vmul.f32 %v477, %v509
  %v511 = vsub.f32 1.0, %v510
  %v512 = vmul.f32 %v509, %v511
  %v513 = vadd.f32 %v509, %v512
  %vm514 = vweird.f32 %v477
  %vm515 = vweird.f32 %v509
  %vm516 = vmor %vm514, %vm515
  %v517 = vsel %vm516, %v509, %v513
  %v518 = vand.u32 2147483647, %v477
  %vm519 = vcmp.eq.f32.partialorder %v518, 8.507059e+37
  %v520 = vand.u32 %v477, 2147483648
  %v521 = vor.u32 1.1754944e-38, %v520
  %v522 = vsel %vm519, %v521, %v517
  %v523 = vmul.f32 1.0, %v522
  %v524 = vrcp.pop %v478
  %v525 = vmul.f32 %v478, %v524
  %v526 = vsub.f32 1.0, %v525
  %v527 = vmul.f32 %v524, %v526
  %v528 = vadd.f32 %v524, %v527
  %vm529 = vweird.f32 %v478
  %vm530 = vweird.f32 %v524
  %vm531 = vmor %vm529, %vm530
  %v532 = vsel %vm531, %v524, %v528
  %v533 = vand.u32 2147483647, %v478
  %vm534 = vcmp.eq.f32.partialorder %v533, 8.507059e+37
  %v535 = vand.u32 %v478, 2147483648
  %v536 = vor.u32 1.1754944e-38, %v535
  %v537 = vsel %vm534, %v536, %v532
  %v538 = vmul.f32 1.0, %v537
  %v539 = vrcp.pop %v479
  %v540 = vmul.f32 %v479, %v539
  %v541 = vsub.f32 1.0, %v540
  %v542 = vmul.f32 %v539, %v541
  %v543 = vadd.f32 %v539, %v542
  %vm544 = vweird.f32 %v479
  %vm545 = vweird.f32 %v539
  %vm546 = vmor %vm544, %vm545
  %v547 = vsel %vm546, %v539, %v543
  %v548 = vand.u32 2147483647, %v479
  %vm549 = vcmp.eq.f32.partialorder %v548, 8.507059e+37
  %v550 = vand.u32 %v479, 2147483648
  %v551 = vor.u32 1.1754944e-38, %v550
  %v552 = vsel %vm549, %v551, %v547
  %v553 = vmul.f32 1.0, %v552
  %v554 = vrcp.pop %v480
  %v555 = vmul.f32 %v480, %v554
  %v556 = vsub.f32 1.0, %v555
  %v557 = vmul.f32 %v554, %v556
  %v558 = vadd.f32 %v554, %v557
  %vm559 = vweird.f32 %v480
  %vm560 = vweird.f32 %v554
  %vm561 = vmor %vm559, %vm560
  %v562 = vsel %vm561, %v554, %v558
  %v563 = vand.u32 2147483647, %v480
  %vm564 = vcmp.eq.f32.partialorder %v563, 8.507059e+37
  %v565 = vand.u32 %v480, 2147483648
  %v566 = vor.u32 1.1754944e-38, %v565
  %v567 = vsel %vm564, %v566, %v562
  %v568 = vmul.f32 1.0, %v567
  %v569 = vrcp.pop %v481
  %v570 = vmul.f32 %v481, %v569
  %v571 = vsub.f32 1.0, %v570
  %v572 = vmul.f32 %v569, %v571
  %v573 = vadd.f32 %v569, %v572
  %vm574 = vweird.f32 %v481
  %vm575 = vweird.f32 %v569
  %vm576 = vmor %vm574, %vm575
  %v577 = vsel %vm576, %v569, %v573
  %v578 = vand.u32 2147483647, %v481
  %vm579 = vcmp.eq.f32.partialorder %v578, 8.507059e+37
  %v580 = vand.u32 %v481, 2147483648
  %v581 = vor.u32 1.1754944e-38, %v580
  %v582 = vsel %vm579, %v581, %v577
  %v583 = vmul.f32 1.0, %v582
  %v584 = vrcp.pop %v482
  %v585 = vmul.f32 %v482, %v584
  %v586 = vsub.f32 1.0, %v585
  %v587 = vmul.f32 %v584, %v586
  %v588 = vadd.f32 %v584, %v587
  %vm589 = vweird.f32 %v482
  %vm590 = vweird.f32 %v584
  %vm591 = vmor %vm589, %vm590
  %v592 = vsel %vm591, %v584, %v588
  %v593 = vand.u32 2147483647, %v482
  %vm594 = vcmp.eq.f32.partialorder %v593, 8.507059e+37
  %v595 = vand.u32 %v482, 2147483648
  %v596 = vor.u32 1.1754944e-38, %v595
  %v597 = vsel %vm594, %v596, %v592
  %v598 = vmul.f32 1.0, %v597
  %v599 = vrcp.pop %v483
  %v600 = vmul.f32 %v483, %v599
  %v601 = vsub.f32 1.0, %v600
  %v602 = vmul.f32 %v599, %v601
  %v603 = vadd.f32 %v599, %v602
  %vm604 = vweird.f32 %v483
  %vm605 = vweird.f32 %v599
  %vm606 = vmor %vm604, %vm605
  %v607 = vsel %vm606, %v599, %v603
  %v608 = vand.u32 2147483647, %v483
  %vm609 = vcmp.eq.f32.partialorder %v608, 8.507059e+37
  %v610 = vand.u32 %v483, 2147483648
  %v611 = vor.u32 1.1754944e-38, %v610
  %v612 = vsel %vm609, %v611, %v607
  %v613 = vmul.f32 1.0, %v612
  %v614 = vrcp.pop %v484
  %v615 = vmul.f32 %v484, %v614
  %v616 = vsub.f32 1.0, %v615
  %v617 = vmul.f32 %v614, %v616
  %v618 = vadd.f32 %v614, %v617
  %vm619 = vweird.f32 %v484
  %vm620 = vweird.f32 %v614
  %vm621 = vmor %vm619, %vm620
  %v622 = vsel %vm621, %v614, %v618
  %v623 = vand.u32 2147483647, %v484
  %vm624 = vcmp.eq.f32.partialorder %v623, 8.507059e+37
  %v625 = vand.u32 %v484, 2147483648
  %v626 = vor.u32 1.1754944e-38, %v625
  %v627 = vsel %vm624, %v626, %v622
  %v628 = vmul.f32 1.0, %v627
  %v629 = vrcp.pop %v485
  %v630 = vmul.f32 %v485, %v629
  %v631 = vsub.f32 1.0, %v630
  %v632 = vmul.f32 %v629, %v631
  %v633 = vadd.f32 %v629, %v632
  %vm634 = vweird.f32 %v485
  %vm635 = vweird.f32 %v629
  %vm636 = vmor %vm634, %vm635
  %v637 = vsel %vm636, %v629, %v633
  %v638 = vand.u32 2147483647, %v485
  %vm639 = vcmp.eq.f32.partialorder %v638, 8.507059e+37
  %v640 = vand.u32 %v485, 2147483648
  %v641 = vor.u32 1.1754944e-38, %v640
  %v642 = vsel %vm639, %v641, %v637
  %v643 = vmul.f32 1.0, %v642
  %v644 = vrcp.pop %v486
  %v645 = vmul.f32 %v486, %v644
  %v646 = vsub.f32 1.0, %v645
  %v647 = vmul.f32 %v644, %v646
  %v648 = vadd.f32 %v644, %v647
  %vm649 = vweird.f32 %v486
  %vm650 = vweird.f32 %v644
  %vm651 = vmor %vm649, %vm650
  %v652 = vsel %vm651, %v644, %v648
  %v653 = vand.u32 2147483647, %v486
  %vm654 = vcmp.eq.f32.partialorder %v653, 8.507059e+37
  %v655 = vand.u32 %v486, 2147483648
  %v656 = vor.u32 1.1754944e-38, %v655
  %v657 = vsel %vm654, %v656, %v652
  %v658 = vmul.f32 1.0, %v657
  %v659 = vrcp.pop %v487
  %v660 = vmul.f32 %v487, %v659
  %v661 = vsub.f32 1.0, %v660
  %v662 = vmul.f32 %v659, %v661
  %v663 = vadd.f32 %v659, %v662
  %vm664 = vweird.f32 %v487
  %vm665 = vweird.f32 %v659
  %vm666 = vmor %vm664, %vm665
  %v667 = vsel %vm666, %v659, %v663
  %v668 = vand.u32 2147483647, %v487
  %vm669 = vcmp.eq.f32.partialorder %v668, 8.507059e+37
  %v670 = vand.u32 %v487, 2147483648
  %v671 = vor.u32 1.1754944e-38, %v670
  %v672 = vsel %vm669, %v671, %v667
  %v673 = vmul.f32 1.0, %v672
  %v674 = vrcp.pop %v488
  %v675 = vmul.f32 %v488, %v674
  %v676 = vsub.f32 1.0, %v675
  %v677 = vmul.f32 %v674, %v676
  %v678 = vadd.f32 %v674, %v677
  %vm679 = vweird.f32 %v488
  %vm680 = vweird.f32 %v674
  %vm681 = vmor %vm679, %vm680
  %v682 = vsel %vm681, %v674, %v678
  %v683 = vand.u32 2147483647, %v488
  %vm684 = vcmp.eq.f32.partialorder %v683, 8.507059e+37
  %v685 = vand.u32 %v488, 2147483648
  %v686 = vor.u32 1.1754944e-38, %v685
  %v687 = vsel %vm684, %v686, %v682
  %v688 = vmul.f32 1.0, %v687
  %v689 = vrcp.pop %v489
  %v690 = vmul.f32 %v489, %v689
  %v691 = vsub.f32 1.0, %v690
  %v692 = vmul.f32 %v689, %v691
  %v693 = vadd.f32 %v689, %v692
  %vm694 = vweird.f32 %v489
  %vm695 = vweird.f32 %v689
  %vm696 = vmor %vm694, %vm695
  %v697 = vsel %vm696, %v689, %v693
  %v698 = vand.u32 2147483647, %v489
  %vm699 = vcmp.eq.f32.partialorder %v698, 8.507059e+37
  %v700 = vand.u32 %v489, 2147483648
  %v701 = vor.u32 1.1754944e-38, %v700
  %v702 = vsel %vm699, %v701, %v697
  %v703 = vmul.f32 1.0, %v702
  %v704 = vrcp.pop %v490
  %v705 = vmul.f32 %v490, %v704
  %v706 = vsub.f32 1.0, %v705
  %v707 = vmul.f32 %v704, %v706
  %v708 = vadd.f32 %v704, %v707
  %vm709 = vweird.f32 %v490
  %vm710 = vweird.f32 %v704
  %vm711 = vmor %vm709, %vm710
  %v712 = vsel %vm711, %v704, %v708
  %v713 = vand.u32 2147483647, %v490
  %vm714 = vcmp.eq.f32.partialorder %v713, 8.507059e+37
  %v715 = vand.u32 %v490, 2147483648
  %v716 = vor.u32 1.1754944e-38, %v715
  %v717 = vsel %vm714, %v716, %v712
  %v718 = vmul.f32 1.0, %v717
  %v719 = vrcp.pop %v491
  %v720 = vmul.f32 %v491, %v719
  %v721 = vsub.f32 1.0, %v720
  %v722 = vmul.f32 %v719, %v721
  %v723 = vadd.f32 %v719, %v722
  %vm724 = vweird.f32 %v491
  %vm725 = vweird.f32 %v719
  %vm726 = vmor %vm724, %vm725
  %v727 = vsel %vm726, %v719, %v723
  %v728 = vand.u32 2147483647, %v491
  %vm729 = vcmp.eq.f32.partialorder %v728, 8.507059e+37
  %v730 = vand.u32 %v491, 2147483648
  %v731 = vor.u32 1.1754944e-38, %v730
  %v732 = vsel %vm729, %v731, %v727
  %v733 = vmul.f32 1.0, %v732
  %v734 = vrcp.pop %v492
  %v735 = vmul.f32 %v492, %v734
  %v736 = vsub.f32 1.0, %v735
  %v737 = vmul.f32 %v734, %v736
  %v738 = vadd.f32 %v734, %v737
  %vm739 = vweird.f32 %v492
  %vm740 = vweird.f32 %v734
  %vm741 = vmor %vm739, %vm740
  %v742 = vsel %vm741, %v734, %v738
  %v743 = vand.u32 2147483647, %v492
  %vm744 = vcmp.eq.f32.partialorder %v743, 8.507059e+37
  %v745 = vand.u32 %v492, 2147483648
  %v746 = vor.u32 1.1754944e-38, %v745
  %v747 = vsel %vm744, %v746, %v742
  %v748 = vmul.f32 1.0, %v747
  %v749 = vrcp.pop %v493
  %v750 = vmul.f32 %v493, %v749
  %v751 = vsub.f32 1.0, %v750
  %v752 = vmul.f32 %v749, %v751
  %v753 = vadd.f32 %v749, %v752
  %vm754 = vweird.f32 %v493
  %vm755 = vweird.f32 %v749
  %vm756 = vmor %vm754, %vm755
  %v757 = vsel %vm756, %v749, %v753
  %v758 = vand.u32 2147483647, %v493
  %vm759 = vcmp.eq.f32.partialorder %v758, 8.507059e+37
  %v760 = vand.u32 %v493, 2147483648
  %v761 = vor.u32 1.1754944e-38, %v760
  %v762 = vsel %vm759, %v761, %v757
  %v763 = vmul.f32 1.0, %v762
  %v764 = vrcp.pop %v494
  %v765 = vmul.f32 %v494, %v764
  %v766 = vsub.f32 1.0, %v765
  %v767 = vmul.f32 %v764, %v766
  %v768 = vadd.f32 %v764, %v767
  %vm769 = vweird.f32 %v494
  %vm770 = vweird.f32 %v764
  %vm771 = vmor %vm769, %vm770
  %v772 = vsel %vm771, %v764, %v768
  %v773 = vand.u32 2147483647, %v494
  %vm774 = vcmp.eq.f32.partialorder %v773, 8.507059e+37
  %v775 = vand.u32 %v494, 2147483648
  %v776 = vor.u32 1.1754944e-38, %v775
  %v777 = vsel %vm774, %v776, %v772
  %v778 = vmul.f32 1.0, %v777
  %v779 = vrcp.pop %v495
  %v780 = vmul.f32 %v495, %v779
  %v781 = vsub.f32 1.0, %v780
  %v782 = vmul.f32 %v779, %v781
  %v783 = vadd.f32 %v779, %v782
  %vm784 = vweird.f32 %v495
  %vm785 = vweird.f32 %v779
  %vm786 = vmor %vm784, %vm785
  %v787 = vsel %vm786, %v779, %v783
  %v788 = vand.u32 2147483647, %v495
  %vm789 = vcmp.eq.f32.partialorder %v788, 8.507059e+37
  %v790 = vand.u32 %v495, 2147483648
  %v791 = vor.u32 1.1754944e-38, %v790
  %v792 = vsel %vm789, %v791, %v787
  %v793 = vmul.f32 1.0, %v792
  %v794 = vrcp.pop %v496
  %v795 = vmul.f32 %v496, %v794
  %v796 = vsub.f32 1.0, %v795
  %v797 = vmul.f32 %v794, %v796
  %v798 = vadd.f32 %v794, %v797
  %vm799 = vweird.f32 %v496
  %vm800 = vweird.f32 %v794
  %vm801 = vmor %vm799, %vm800
  %v802 = vsel %vm801, %v794, %v798
  %v803 = vand.u32 2147483647, %v496
  %vm804 = vcmp.eq.f32.partialorder %v803, 8.507059e+37
  %v805 = vand.u32 %v496, 2147483648
  %v806 = vor.u32 1.1754944e-38, %v805
  %v807 = vsel %vm804, %v806, %v802
  %v808 = vmul.f32 1.0, %v807
  %v809 = vrcp.pop %v497
  %v810 = vmul.f32 %v497, %v809
  %v811 = vsub.f32 1.0, %v810
  %v812 = vmul.f32 %v809, %v811
  %v813 = vadd.f32 %v809, %v812
  %vm814 = vweird.f32 %v497
  %vm815 = vweird.f32 %v809
  %vm816 = vmor %vm814, %vm815
  %v817 = vsel %vm816, %v809, %v813
  %v818 = vand.u32 2147483647, %v497
  %vm819 = vcmp.eq.f32.partialorder %v818, 8.507059e+37
  %v820 = vand.u32 %v497, 2147483648
  %v821 = vor.u32 1.1754944e-38, %v820
  %v822 = vsel %vm819, %v821, %v817
  %v823 = vmul.f32 1.0, %v822
  %v824 = vrcp.pop %v498
  %v825 = vmul.f32 %v498, %v824
  %v826 = vsub.f32 1.0, %v825
  %v827 = vmul.f32 %v824, %v826
  %v828 = vadd.f32 %v824, %v827
  %vm829 = vweird.f32 %v498
  %vm830 = vweird.f32 %v824
  %vm831 = vmor %vm829, %vm830
  %v832 = vsel %vm831, %v824, %v828
  %v833 = vand.u32 2147483647, %v498
  %vm834 = vcmp.eq.f32.partialorder %v833, 8.507059e+37
  %v835 = vand.u32 %v498, 2147483648
  %v836 = vor.u32 1.1754944e-38, %v835
  %v837 = vsel %vm834, %v836, %v832
  %v838 = vmul.f32 1.0, %v837
  %v839 = vrcp.pop %v499
  %v840 = vmul.f32 %v499, %v839
  %v841 = vsub.f32 1.0, %v840
  %v842 = vmul.f32 %v839, %v841
  %v843 = vadd.f32 %v839, %v842
  %vm844 = vweird.f32 %v499
  %vm845 = vweird.f32 %v839
  %vm846 = vmor %vm844, %vm845
  %v847 = vsel %vm846, %v839, %v843
  %v848 = vand.u32 2147483647, %v499
  %vm849 = vcmp.eq.f32.partialorder %v848, 8.507059e+37
  %v850 = vand.u32 %v499, 2147483648
  %v851 = vor.u32 1.1754944e-38, %v850
  %v852 = vsel %vm849, %v851, %v847
  %v853 = vmul.f32 1.0, %v852
  %v854 = vrcp.pop %v500
  %v855 = vmul.f32 %v500, %v854
  %v856 = vsub.f32 1.0, %v855
  %v857 = vmul.f32 %v854, %v856
  %v858 = vadd.f32 %v854, %v857
  %vm859 = vweird.f32 %v500
  %vm860 = vweird.f32 %v854
  %vm861 = vmor %vm859, %vm860
  %v862 = vsel %vm861, %v854, %v858
  %v863 = vand.u32 2147483647, %v500
  %vm864 = vcmp.eq.f32.partialorder %v863, 8.507059e+37
  %v865 = vand.u32 %v500, 2147483648
  %v866 = vor.u32 1.1754944e-38, %v865
  %v867 = vsel %vm864, %v866, %v862
  %v868 = vmul.f32 1.0, %v867
  %v869 = vrcp.pop %v501
  %v870 = vmul.f32 %v501, %v869
  %v871 = vsub.f32 1.0, %v870
  %v872 = vmul.f32 %v869, %v871
  %v873 = vadd.f32 %v869, %v872
  %vm874 = vweird.f32 %v501
  %vm875 = vweird.f32 %v869
  %vm876 = vmor %vm874, %vm875
  %v877 = vsel %vm876, %v869, %v873
  %v878 = vand.u32 2147483647, %v501
  %vm879 = vcmp.eq.f32.partialorder %v878, 8.507059e+37
  %v880 = vand.u32 %v501, 2147483648
  %v881 = vor.u32 1.1754944e-38, %v880
  %v882 = vsel %vm879, %v881, %v877
  %v883 = vmul.f32 1.0, %v882
  %v884 = vrcp.pop %v502
  %v885 = vmul.f32 %v502, %v884
  %v886 = vsub.f32 1.0, %v885
  %v887 = vmul.f32 %v884, %v886
  %v888 = vadd.f32 %v884, %v887
  %vm889 = vweird.f32 %v502
  %vm890 = vweird.f32 %v884
  %vm891 = vmor %vm889, %vm890
  %v892 = vsel %vm891, %v884, %v888
  %v893 = vand.u32 2147483647, %v502
  %vm894 = vcmp.eq.f32.partialorder %v893, 8.507059e+37
  %v895 = vand.u32 %v502, 2147483648
  %v896 = vor.u32 1.1754944e-38, %v895
  %v897 = vsel %vm894, %v896, %v892
  %v898 = vmul.f32 1.0, %v897
  %v899 = vrcp.pop %v503
  %v900 = vmul.f32 %v503, %v899
  %v901 = vsub.f32 1.0, %v900
  %v902 = vmul.f32 %v899, %v901
  %v903 = vadd.f32 %v899, %v902
  %vm904 = vweird.f32 %v503
  %vm905 = vweird.f32 %v899
  %vm906 = vmor %vm904, %vm905
  %v907 = vsel %vm906, %v899, %v903
  %v908 = vand.u32 2147483647, %v503
  %vm909 = vcmp.eq.f32.partialorder %v908, 8.507059e+37
  %v910 = vand.u32 %v503, 2147483648
  %v911 = vor.u32 1.1754944e-38, %v910
  %v912 = vsel %vm909, %v911, %v907
  %v913 = vmul.f32 1.0, %v912
  %v914 = vrcp.pop %v504
  %v915 = vmul.f32 %v504, %v914
  %v916 = vsub.f32 1.0, %v915
  %v917 = vmul.f32 %v914, %v916
  %v918 = vadd.f32 %v914, %v917
  %vm919 = vweird.f32 %v504
  %vm920 = vweird.f32 %v914
  %vm921 = vmor %vm919, %vm920
  %v922 = vsel %vm921, %v914, %v918
  %v923 = vand.u32 2147483647, %v504
  %vm924 = vcmp.eq.f32.partialorder %v923, 8.507059e+37
  %v925 = vand.u32 %v504, 2147483648
  %v926 = vor.u32 1.1754944e-38, %v925
  %v927 = vsel %vm924, %v926, %v922
  %v928 = vmul.f32 1.0, %v927
  %v929 = vrcp.pop %v505
  %v930 = vmul.f32 %v505, %v929
  %v931 = vsub.f32 1.0, %v930
  %v932 = vmul.f32 %v929, %v931
  %v933 = vadd.f32 %v929, %v932
  %vm934 = vweird.f32 %v505
  %vm935 = vweird.f32 %v929
  %vm936 = vmor %vm934, %vm935
  %v937 = vsel %vm936, %v929, %v933
  %v938 = vand.u32 2147483647, %v505
  %vm939 = vcmp.eq.f32.partialorder %v938, 8.507059e+37
  %v940 = vand.u32 %v505, 2147483648
  %v941 = vor.u32 1.1754944e-38, %v940
  %v942 = vsel %vm939, %v941, %v937
  %v943 = vmul.f32 1.0, %v942
  %v944 = vrcp.pop %v506
  %v945 = vmul.f32 %v506, %v944
  %v946 = vsub.f32 1.0, %v945
  %v947 = vmul.f32 %v944, %v946
  %v948 = vadd.f32 %v944, %v947
  %vm949 = vweird.f32 %v506
  %vm950 = vweird.f32 %v944
  %vm951 = vmor %vm949, %vm950
  %v952 = vsel %vm951, %v944, %v948
  %v953 = vand.u32 2147483647, %v506
  %vm954 = vcmp.eq.f32.partialorder %v953, 8.507059e+37
  %v955 = vand.u32 %v506, 2147483648
  %v956 = vor.u32 1.1754944e-38, %v955
  %v957 = vsel %vm954, %v956, %v952
  %v958 = vmul.f32 1.0, %v957
  %v959 = vrcp.pop %v507
  %v960 = vmul.f32 %v507, %v959
  %v961 = vsub.f32 1.0, %v960
  %v962 = vmul.f32 %v959, %v961
  %v963 = vadd.f32 %v959, %v962
  %vm964 = vweird.f32 %v507
  %vm965 = vweird.f32 %v959
  %vm966 = vmor %vm964, %vm965
  %v967 = vsel %vm966, %v959, %v963
  %v968 = vand.u32 2147483647, %v507
  %vm969 = vcmp.eq.f32.partialorder %v968, 8.507059e+37
  %v970 = vand.u32 %v507, 2147483648
  %v971 = vor.u32 1.1754944e-38, %v970
  %v972 = vsel %vm969, %v971, %v967
  %v973 = vmul.f32 1.0, %v972
  %v974 = vrcp.pop %v508
  %v975 = vmul.f32 %v508, %v974
  %v976 = vsub.f32 1.0, %v975
  %v977 = vmul.f32 %v974, %v976
  %v978 = vadd.f32 %v974, %v977
  %vm979 = vweird.f32 %v508
  %vm980 = vweird.f32 %v974
  %vm981 = vmor %vm979, %vm980
  %v982 = vsel %vm981, %v974, %v978
  %v983 = vand.u32 2147483647, %v508
  %vm984 = vcmp.eq.f32.partialorder %v983, 8.507059e+37
  %v985 = vand.u32 %v508, 2147483648
  %v986 = vor.u32 1.1754944e-38, %v985
  %v987 = vsel %vm984, %v986, %v982
  %v988 = vmul.f32 1.0, %v987
  %v989 = vmul.f32 %v285, %v523
  %v990 = vmul.f32 %v342, %v538
  %v991 = vmul.f32 %v287, %v553
  %v992 = vmul.f32 %v344, %v568
  %v993 = vmul.f32 %v290, %v583
  %v994 = vmul.f32 %v347, %v598
  %v995 = vmul.f32 %v292, %v613
  %v996 = vmul.f32 %v349, %v628
  %v997 = vmul.f32 %v295, %v643
  %v998 = vmul.f32 %v352, %v658
  %v999 = vmul.f32 %v297, %v673
  %v1000 = vmul.f32 %v354, %v688
  %v1001 = vmul.f32 %v300, %v703
  %v1002 = vmul.f32 %v357, %v718
  %v1003 = vmul.f32 %v302, %v733
  %v1004 = vmul.f32 %v359, %v748
  %v1005 = vmul.f32 %v305, %v763
  %v1006 = vmul.f32 %v362, %v778
  %v1007 = vmul.f32 %v307, %v793
  %v1008 = vmul.f32 %v364, %v808
  %v1009 = vmul.f32 %v310, %v823
  %v1010 = vmul.f32 %v367, %v838
  %v1011 = vmul.f32 %v312, %v853
  %v1012 = vmul.f32 %v369, %v868
  %v1013 = vmul.f32 %v315, %v883
  %v1014 = vmul.f32 %v372, %v898
  %v1015 = vmul.f32 %v317, %v913
  %v1016 = vmul.f32 %v374, %v928
  %v1017 = vmul.f32 %v320, %v943
  %v1018 = vmul.f32 %v377, %v958
  %v1019 = vmul.f32 %v322, %v973
  %v1020 = vmul.f32 %v379, %v988
  %v1021 = vmul.f32 %v171, %v989
  %v1022 = vmul.f32 %v228, %v990
  %v1023 = vmul.f32 %v173, %v991
  %v1024 = vmul.f32 %v230, %v992
  %v1025 = vmul.f32 %v176, %v993
  %v1026 = vmul.f32 %v233, %v994
  %v1027 = vmul.f32 %v178, %v995
  %v1028 = vmul.f32 %v235, %v996
  %v1029 = vmul.f32 %v181, %v997
  %v1030 = vmul.f32 %v238, %v998
  %v1031 = vmul.f32 %v183, %v999
  %v1032 = vmul.f32 %v240, %v1000
  %v1033 = vmul.f32 %v186, %v1001
  %v1034 = vmul.f32 %v243, %v1002
  %v1035 = vmul.f32 %v188, %v1003
  %v1036 = vmul.f32 %v245, %v1004
  %v1037 = vmul.f32 %v191, %v1005
  %v1038 = vmul.f32 %v248, %v1006
  %v1039 = vmul.f32 %v193, %v1007
  %v1040 = vmul.f32 %v250, %v1008
  %v1041 = vmul.f32 %v196, %v1009
  %v1042 = vmul.f32 %v253, %v1010
  %v1043 = vmul.f32 %v198, %v1011
  %v1044 = vmul.f32 %v255, %v1012
  %v1045 = vmul.f32 %v201, %v1013
  %v1046 = vmul.f32 %v258, %v1014
  %v1047 = vmul.f32 %v203, %v1015
  %v1048 = vmul.f32 %v260, %v1016
  %v1049 = vmul.f32 %v206, %v1017
  %v1050 = vmul.f32 %v263, %v1018
  %v1051 = vmul.f32 %v208, %v1019
  %v1052 = vmul.f32 %v265, %v1020
  %v1053 = vld [vmem:[%s3] sm:$0xff]
  %v1054 = vld [vmem:[%s3 + $0x8] sm:$0xff]
  %v1055 = vld [vmem:[%s3 + $0x10] sm:$0xff]
  %v1056 = vld [vmem:[%s3 + $0x18] sm:$0xff]
  %v1057 = vld [vmem:[%s3 + $0x20] sm:$0xff]
  %v1058 = vld [vmem:[%s3 + $0x28] sm:$0xff]
  %v1059 = vld [vmem:[%s3 + $0x30] sm:$0xff]
  %v1060 = vld [vmem:[%s3 + $0x38] sm:$0xff]
  %v1061 = vld [vmem:[%s3 + $0x40] sm:$0xff]
  %v1062 = vld [vmem:[%s3 + $0x48] sm:$0xff]
  %v1063 = vld [vmem:[%s3 + $0x50] sm:$0xff]
  %v1064 = vld [vmem:[%s3 + $0x58] sm:$0xff]
  %v1065 = vld [vmem:[%s3 + $0x60] sm:$0xff]
  %v1066 = vld [vmem:[%s3 + $0x68] sm:$0xff]
  %v1067 = vld [vmem:[%s3 + $0x70] sm:$0xff]
  %v1068 = vld [vmem:[%s3 + $0x78] sm:$0xff]
  %v1069 = vld [vmem:[%s3 + $0x80] sm:$0xff]
  %v1070 = vld [vmem:[%s3 + $0x88] sm:$0xff]
  %v1071 = vld [vmem:[%s3 + $0x90] sm:$0xff]
  %v1072 = vld [vmem:[%s3 + $0x98] sm:$0xff]
  %v1073 = vld [vmem:[%s3 + $0xa0] sm:$0xff]
  %v1074 = vld [vmem:[%s3 + $0xa8] sm:$0xff]
  %v1075 = vld [vmem:[%s3 + $0xb0] sm:$0xff]
  %v1076 = vld [vmem:[%s3 + $0xb8] sm:$0xff]
  %v1077 = vld [vmem:[%s3 + $0xc0] sm:$0xff]
  %v1078 = vld [vmem:[%s3 + $0xc8] sm:$0xff]
  %v1079 = vld [vmem:[%s3 + $0xd0] sm:$0xff]
  %v1080 = vld [vmem:[%s3 + $0xd8] sm:$0xff]
  %v1081 = vld [vmem:[%s3 + $0xe0] sm:$0xff]
  %v1082 = vld [vmem:[%s3 + $0xe8] sm:$0xff]
  %v1083 = vld [vmem:[%s3 + $0xf0] sm:$0xff]
  %v1084 = vld [vmem:[%s3 + $0xf8] sm:$0xff]
  %v1085 = vld [vmem:[#allocation2] sm:$0x1]
  %v1087 = vperm.slane %v1085, 0
  %1089 = vmatpush.msra.mxu0 %v1068
  %1090 = vmatpush.msra.mxu0 %v1067
  %1091 = vmatpush.msra.mxu0 %v1066
  %1092 = vmatpush.msra.mxu0 %v1065
  %1093 = vmatpush.msra.mxu0 %v1064
  %1094 = vmatpush.msra.mxu0 %v1063
  %1095 = vmatpush.msra.mxu0 %v1062
  %1096 = vmatpush.msra.mxu0 %v1061
  %1097 = vmatpush.msra.mxu0 %v1060
  %1098 = vmatpush.msra.mxu0 %v1059
  %1099 = vmatpush.msra.mxu0 %v1058
  %1100 = vmatpush.msra.mxu0 %v1057
  %1101 = vmatpush.msra.mxu0 %v1056
  %1102 = vmatpush.msra.mxu0 %v1055
  %1103 = vmatpush.msra.mxu0 %v1054
  %1104 = vmatpush.msra.mxu0 %v1053
  %1105 = vmatmul.f32.gmra.mxu0 %v1021
  %v1106 = vpop.f32.mrf.mxu0
  %v1107 = vadd.f32 %v1087, %v1106
  %1108 = vmatmul.f32.gmra.mxu0 %v1023
  %v1109 = vpop.f32.mrf.mxu0
  %v1110 = vadd.f32 %v1087, %v1109
  %1111 = vmatmul.f32.gmra.mxu0 %v1025
  %v1112 = vpop.f32.mrf.mxu0
  %v1113 = vadd.f32 %v1087, %v1112
  %1114 = vmatmul.f32.gmra.mxu0 %v1027
  %v1115 = vpop.f32.mrf.mxu0
  %v1116 = vadd.f32 %v1087, %v1115
  %1117 = vmatmul.f32.gmra.mxu0 %v1029
  %v1118 = vpop.f32.mrf.mxu0
  %v1119 = vadd.f32 %v1087, %v1118
  %1120 = vmatmul.f32.gmra.mxu0 %v1031
  %v1121 = vpop.f32.mrf.mxu0
  %v1122 = vadd.f32 %v1087, %v1121
  %1123 = vmatmul.f32.gmra.mxu0 %v1033
  %v1124 = vpop.f32.mrf.mxu0
  %v1125 = vadd.f32 %v1087, %v1124
  %1126 = vmatmul.f32.gmra.mxu0 %v1035
  %v1127 = vpop.f32.mrf.mxu0
  %v1128 = vadd.f32 %v1087, %v1127
  %1129 = vmatmul.f32.gmra.mxu0 %v1037
  %v1130 = vpop.f32.mrf.mxu0
  %v1131 = vadd.f32 %v1087, %v1130
  %1132 = vmatmul.f32.gmra.mxu0 %v1039
  %v1133 = vpop.f32.mrf.mxu0
  %v1134 = vadd.f32 %v1087, %v1133
  %1135 = vmatmul.f32.gmra.mxu0 %v1041
  %v1136 = vpop.f32.mrf.mxu0
  %v1137 = vadd.f32 %v1087, %v1136
  %1138 = vmatmul.f32.gmra.mxu0 %v1043
  %v1139 = vpop.f32.mrf.mxu0
  %v1140 = vadd.f32 %v1087, %v1139
  %1141 = vmatmul.f32.gmra.mxu0 %v1045
  %v1142 = vpop.f32.mrf.mxu0
  %v1143 = vadd.f32 %v1087, %v1142
  %1144 = vmatmul.f32.gmra.mxu0 %v1047
  %v1145 = vpop.f32.mrf.mxu0
  %v1146 = vadd.f32 %v1087, %v1145
  %1147 = vmatmul.f32.gmra.mxu0 %v1049
  %v1148 = vpop.f32.mrf.mxu0
  %v1149 = vadd.f32 %v1087, %v1148
  %1150 = vmatmul.f32.gmra.mxu0 %v1051
  %v1151 = vpop.f32.mrf.mxu0
  %v1152 = vadd.f32 %v1087, %v1151
  %1153 = vdwg.mxu0
  %1154 = vmatpush.msra.mxu0 %v1084
  %1155 = vmatpush.msra.mxu0 %v1083
  %1156 = vmatpush.msra.mxu0 %v1082
  %1157 = vmatpush.msra.mxu0 %v1081
  %1158 = vmatpush.msra.mxu0 %v1080
  %1159 = vmatpush.msra.mxu0 %v1079
  %1160 = vmatpush.msra.mxu0 %v1078
  %1161 = vmatpush.msra.mxu0 %v1077
  %1162 = vmatpush.msra.mxu0 %v1076
  %1163 = vmatpush.msra.mxu0 %v1075
  %1164 = vmatpush.msra.mxu0 %v1074
  %1165 = vmatpush.msra.mxu0 %v1073
  %1166 = vmatpush.msra.mxu0 %v1072
  %1167 = vmatpush.msra.mxu0 %v1071
  %1168 = vmatpush.msra.mxu0 %v1070
  %1169 = vmatpush.msra.mxu0 %v1069
  %1170 = vmatmul.f32.gmra.mxu0 %v1022
  %v1171 = vpop.f32.mrf.mxu0
  %v1172 = vadd.f32 %v1107, %v1171
  %1173 = vmatmul.f32.gmra.mxu0 %v1024
  %v1174 = vpop.f32.mrf.mxu0
  %v1175 = vadd.f32 %v1110, %v1174
  %1176 = vmatmul.f32.gmra.mxu0 %v1026
  %v1177 = vpop.f32.mrf.mxu0
  %v1178 = vadd.f32 %v1113, %v1177
  %1179 = vmatmul.f32.gmra.mxu0 %v1028
  %v1180 = vpop.f32.mrf.mxu0
  %v1181 = vadd.f32 %v1116, %v1180
  %1182 = vmatmul.f32.gmra.mxu0 %v1030
  %v1183 = vpop.f32.mrf.mxu0
  %v1184 = vadd.f32 %v1119, %v1183
  %1185 = vmatmul.f32.gmra.mxu0 %v1032
  %v1186 = vpop.f32.mrf.mxu0
  %v1187 = vadd.f32 %v1122, %v1186
  %1188 = vmatmul.f32.gmra.mxu0 %v1034
  %v1189 = vpop.f32.mrf.mxu0
  %v1190 = vadd.f32 %v1125, %v1189
  %1191 = vmatmul.f32.gmra.mxu0 %v1036
  %v1192 = vpop.f32.mrf.mxu0
  %v1193 = vadd.f32 %v1128, %v1192
  %1194 = vmatmul.f32.gmra.mxu0 %v1038
  %v1195 = vpop.f32.mrf.mxu0
  %v1196 = vadd.f32 %v1131, %v1195
  %1197 = vmatmul.f32.gmra.mxu0 %v1040
  %v1198 = vpop.f32.mrf.mxu0
  %v1199 = vadd.f32 %v1134, %v1198
  %1200 = vmatmul.f32.gmra.mxu0 %v1042
  %v1201 = vpop.f32.mrf.mxu0
  %v1202 = vadd.f32 %v1137, %v1201
  %1203 = vmatmul.f32.gmra.mxu0 %v1044
  %v1204 = vpop.f32.mrf.mxu0
  %v1205 = vadd.f32 %v1140, %v1204
  %1206 = vmatmul.f32.gmra.mxu0 %v1046
  %v1207 = vpop.f32.mrf.mxu0
  %v1208 = vadd.f32 %v1143, %v1207
  %1209 = vmatmul.f32.gmra.mxu0 %v1048
  %v1210 = vpop.f32.mrf.mxu0
  %v1211 = vadd.f32 %v1146, %v1210
  %1212 = vmatmul.f32.gmra.mxu0 %v1050
  %v1213 = vpop.f32.mrf.mxu0
  %v1214 = vadd.f32 %v1149, %v1213
  %1215 = vmatmul.f32.gmra.mxu0 %v1052
  %v1216 = vpop.f32.mrf.mxu0
  %v1217 = vadd.f32 %v1152, %v1216
  %1218 = vdwg.mxu0
  %1235 = vset.pattern.permute.xlu0 0
  %1236 = vperm.xlu0 %1235, %v1172
  %v1237 = vpop.permute.xlu0 %1236
  %1238 = vset.pattern.permute.xlu0 0
  %1239 = vperm.xlu0 %1238, %v1175
  %v1240 = vpop.permute.xlu0 %1239
  %1241 = vset.pattern.permute.xlu0 0
  %1242 = vperm.xlu0 %1241, %v1178
  %v1243 = vpop.permute.xlu0 %1242
  %1244 = vset.pattern.permute.xlu0 0
  %1245 = vperm.xlu0 %1244, %v1181
  %v1246 = vpop.permute.xlu0 %1245
  %1247 = vset.pattern.permute.xlu0 0
  %1248 = vperm.xlu0 %1247, %v1184
  %v1249 = vpop.permute.xlu0 %1248
  %1250 = vset.pattern.permute.xlu0 0
  %1251 = vperm.xlu0 %1250, %v1187
  %v1252 = vpop.permute.xlu0 %1251
  %1253 = vset.pattern.permute.xlu0 0
  %1254 = vperm.xlu0 %1253, %v1190
  %v1255 = vpop.permute.xlu0 %1254
  %1256 = vset.pattern.permute.xlu0 0
  %1257 = vperm.xlu0 %1256, %v1193
  %v1258 = vpop.permute.xlu0 %1257
  %1259 = vset.pattern.permute.xlu0 0
  %1260 = vperm.xlu0 %1259, %v1196
  %v1261 = vpop.permute.xlu0 %1260
  %1262 = vset.pattern.permute.xlu0 0
  %1263 = vperm.xlu0 %1262, %v1199
  %v1264 = vpop.permute.xlu0 %1263
  %1265 = vset.pattern.permute.xlu0 0
  %1266 = vperm.xlu0 %1265, %v1202
  %v1267 = vpop.permute.xlu0 %1266
  %1268 = vset.pattern.permute.xlu0 0
  %1269 = vperm.xlu0 %1268, %v1205
  %v1270 = vpop.permute.xlu0 %1269
  %1271 = vset.pattern.permute.xlu0 0
  %1272 = vperm.xlu0 %1271, %v1208
  %v1273 = vpop.permute.xlu0 %1272
  %1274 = vset.pattern.permute.xlu0 0
  %1275 = vperm.xlu0 %1274, %v1211
  %v1276 = vpop.permute.xlu0 %1275
  %1277 = vset.pattern.permute.xlu0 0
  %1278 = vperm.xlu0 %1277, %v1214
  %v1279 = vpop.permute.xlu0 %1278
  %1280 = vset.pattern.permute.xlu0 0
  %1281 = vperm.xlu0 %1280, %v1217
  %v1282 = vpop.permute.xlu0 %1281
  %v1283 = vlaneseq
  %v1284 = vand.u32 %v1283, 127
  %v1285 = vperm.slane %v1237, %v1284
  %v1286 = vadd.s32 %v1284, 4294967288
  %v1287 = vperm.slane %v1240, %v1286
  %vm1288 = vcmask 130112
  %v1289 = vsel %vm1288, %v1287, %v1285
  %v1290 = vadd.s32 %v1284, 4294967280
  %v1291 = vperm.slane %v1243, %v1290
  %vm1292 = vcmask 195712
  %v1293 = vsel %vm1292, %v1291, %v1289
  %v1294 = vadd.s32 %v1284, 4294967272
  %v1295 = vperm.slane %v1246, %v1294
  %vm1296 = vcmask 261312
  %v1297 = vsel %vm1296, %v1295, %v1293
  %v1298 = vadd.s32 %v1284, 4294967264
  %v1299 = vperm.slane %v1249, %v1298
  %vm1300 = vcmask 326912
  %v1301 = vsel %vm1300, %v1299, %v1297
  %v1302 = vadd.s32 %v1284, 4294967256
  %v1303 = vperm.slane %v1252, %v1302
  %vm1304 = vcmask 392512
  %v1305 = vsel %vm1304, %v1303, %v1301
  %v1306 = vadd.s32 %v1284, 4294967248
  %v1307 = vperm.slane %v1255, %v1306
  %vm1308 = vcmask 458112
  %v1309 = vsel %vm1308, %v1307, %v1305
  %v1310 = vadd.s32 %v1284, 4294967240
  %v1311 = vperm.slane %v1258, %v1310
  %vm1312 = vcmask 523712
  %v1313 = vsel %vm1312, %v1311, %v1309
  %v1314 = vadd.s32 %v1284, 4294967232
  %v1315 = vperm.slane %v1261, %v1314
  %vm1316 = vcmask 589312
  %v1317 = vsel %vm1316, %v1315, %v1313
  %v1318 = vadd.s32 %v1284, 4294967224
  %v1319 = vperm.slane %v1264, %v1318
  %vm1320 = vcmask 654912
  %v1321 = vsel %vm1320, %v1319, %v1317
  %v1322 = vadd.s32 %v1284, 4294967216
  %v1323 = vperm.slane %v1267, %v1322
  %vm1324 = vcmask 720512
  %v1325 = vsel %vm1324, %v1323, %v1321
  %v1326 = vadd.s32 %v1284, 4294967208
  %v1327 = vperm.slane %v1270, %v1326
  %vm1328 = vcmask 786112
  %v1329 = vsel %vm1328, %v1327, %v1325
  %v1330 = vadd.s32 %v1284, 4294967200
  %v1331 = vperm.slane %v1273, %v1330
  %vm1332 = vcmask 851712
  %v1333 = vsel %vm1332, %v1331, %v1329
  %v1334 = vadd.s32 %v1284, 4294967192
  %v1335 = vperm.slane %v1276, %v1334
  %vm1336 = vcmask 917312
  %v1337 = vsel %vm1336, %v1335, %v1333
  %v1338 = vadd.s32 %v1284, 4294967184
  %v1339 = vperm.slane %v1279, %v1338
  %vm1340 = vcmask 982912
  %v1341 = vsel %vm1340, %v1339, %v1337
  %v1342 = vadd.s32 %v1284, 4294967176
  %v1343 = vperm.slane %v1282, %v1342
  %vm1344 = vcmask 1048512
  %v1345 = vsel %vm1344, %v1343, %v1341
  %1347 = vst [vmem:[%s5] sm:$0x1] %v1345
  // Predicated region
  $region22: #{swiglu_ranker.1} parent=0 // pred_check
    _
  $region23: #{swiglu_ranker.1} parent=0 // pred_check_branch
    %1349 = sbr.rel (0) target = $region25
  $region24: #{swiglu_ranker.1} parent=0 // pred_region
    _
  $region25: #{swiglu_ranker.1} parent=0 // pred_fallthru
    _
  // Predicated region
  $region26: #{swiglu_ranker.1} parent=0 // pred_check
    _
  $region27: #{swiglu_ranker.1} parent=0 // pred_check_branch
    %1351 = sbr.rel (0) target = $region29
  $region28: #{swiglu_ranker.1} parent=0 // pred_region
    _
  $region29: #{swiglu_ranker.1} parent=0 // pred_fallthru
    _

</llo_original>
